<compile_context>
chip_gen: v7x
topology: tpu7x:2x2x1
jax: 0.10.0
libtpu: 0.0.40
codegen_flags: <defaults>
</compile_context>

<pallas_src>
import functools

import jax
import jax.numpy as jnp
from jax.experimental import pallas as pl
from jax.experimental.pallas import tpu as pltpu


def _round_up(v, m):
    return ((v + m - 1) // m) * m


# ---------------------------------------------------------------------------
# Kernel
# ---------------------------------------------------------------------------
def _point_estimator_kernel(n_pts, pred_len, comp_pad, pts_pad_out,
                            x_ref, w_ref, out_ref):
    x = x_ref[...]                                   # (TB, S+1) f32 (last col = 1 for bias)
    TB = x.shape[0]

    # ---- one fused MXU matmul: [component_lin | pts_lin], biases folded in ----
    y = jnp.dot(x, w_ref[...], preferred_element_type=jnp.float32)   # (TB, fused_dim)

    # component_lin half: 128-aligned static view (zero-padded columns beyond comp_out_dim).
    z = y[:, :comp_pad]                              # (TB, comp_pad)

    # ---- segmented argmax, unrolled over the (small, static) n_pts segments ----
    # Only 2D (TB, pred_len) temporaries; first-occurrence tie-break like torch.argmax.
    lane = jax.lax.broadcasted_iota(jnp.int32, (TB, pred_len), 1)
    cols = []
    for g in range(n_pts):
        lo = comp_pad + g * pred_len
        seg = y[:, lo:lo + pred_len]                                  # (TB, pred_len)
        maxv = jnp.max(seg, axis=-1, keepdims=True)
        cols.append(jnp.min(jnp.where(seg == maxv, lane, pred_len),
                            axis=-1, keepdims=True))                 # (TB, 1)
    idx = jnp.concatenate(cols, axis=-1)                              # (TB, n_pts) i32

    # ---- sort the n_pts indices along the last axis ----------------------------
    if n_pts <= pred_len:
        # Stable rank-compare sort over tiny (TB, n_pts, n_pts) temporaries.
        a = idx[:, :, None]                                           # (TB, n_pts, 1)
        b = idx[:, None, :]                                           # (TB, 1, n_pts)
        pos_i = jax.lax.broadcasted_iota(jnp.int32, (1, n_pts, n_pts), 1)
        pos_j = jax.lax.broadcasted_iota(jnp.int32, (1, n_pts, n_pts), 2)
        rank = jnp.sum(((b < a) | ((b == a) & (pos_j < pos_i))).astype(jnp.int32),
                       axis=-1)                                       # (TB, n_pts) permutation
        out_pos = jax.lax.broadcasted_iota(jnp.int32, (1, 1, n_pts), 2)
        sorted_idx = jnp.sum(jnp.where(rank[:, :, None] == out_pos, idx[:, :, None], 0),
                             axis=1)                                  # (TB, n_pts)
    else:
        # Counting sort over pred_len buckets; inclusive prefix sum on the idle MXU.
        vals = jax.lax.broadcasted_iota(jnp.int32, (1, 1, pred_len), 2)
        hist = jnp.sum((idx[:, :, None] == vals).astype(jnp.float32), axis=1)   # (TB, P)
        triu = (jax.lax.broadcasted_iota(jnp.int32, (pred_len, pred_len), 0)
                <= jax.lax.broadcasted_iota(jnp.int32, (pred_len, pred_len), 1)
                ).astype(jnp.float32)                                 # (P, P) constant
        cum = jnp.dot(hist, triu, preferred_element_type=jnp.float32)             # (TB, P)
        cum = cum.astype(jnp.int32)                                   # exact small counts
        kk = jax.lax.broadcasted_iota(jnp.int32, (1, n_pts, 1), 1)
        sorted_idx = jnp.sum((cum[:, None, :] <= kk).astype(jnp.int32), axis=-1)  # (TB, n_pts)

    # ---- single lane-dense full-width store: [component half | pts (padded to 128k)] ----
    pts_f = sorted_idx.astype(jnp.float32)                            # (TB, n_pts)
    pad_w = pts_pad_out - n_pts
    if pad_w:
        pts_f = jnp.concatenate([pts_f, jnp.zeros((TB, pad_w), jnp.float32)], axis=-1)
    out_ref[...] = jnp.concatenate([z, pts_f], axis=-1)               # one unmasked vst slab


# ---------------------------------------------------------------------------
# Wrapper
# ---------------------------------------------------------------------------
def _pick_batch_tile(B, batch_tile):
    """Multiple-of-8 batch tile; >= 2 grid steps when possible (v7x megacore)."""
    if B <= 8:
        return B
    cap = _round_up(-(-B // 2), 8)          # round_up_8(ceil(B/2)) — always <= B here
    return min(batch_tile, cap)


def point_estimator_forward(x, pts_w, pts_b, comp_w, comp_b,
                            *, n_pts, pred_len, n_params, batch_tile=1024):
    """x: (B, seq_len) f32.  Weights pre-transposed to (in, out); biases (out,) or (1, out)."""
    B, S = x.shape
    n_slots = n_pts + 1
    pts_out_dim = n_pts * pred_len
    comp_out_dim = n_slots * n_params

    # Lane-aligned fused layout: [component (padded to 128k) | pts (padded to 128k)].
    comp_pad = _round_up(comp_out_dim, 128)
    pts_pad = _round_up(pts_out_dim, 128)
    fused_dim = comp_pad + pts_pad
    pts_pad_out = _round_up(max(n_pts, 1), 128)
    out_dim = comp_pad + pts_pad_out

    # Fold both biases into the matmul: ones column on x, bias row on the fused weight.
    S_aug = S + 1
    w_fused = jnp.zeros((S_aug, fused_dim), dtype=jnp.float32)
    w_fused = w_fused.at[:S, :comp_out_dim].set(comp_w.astype(jnp.float32))
    w_fused = w_fused.at[S, :comp_out_dim].set(comp_b.reshape(-1).astype(jnp.float32))
    w_fused = w_fused.at[:S, comp_pad:comp_pad + pts_out_dim].set(pts_w.astype(jnp.float32))
    w_fused = w_fused.at[S, comp_pad:comp_pad + pts_out_dim].set(pts_b.reshape(-1).astype(jnp.float32))
    x_aug = jnp.concatenate([x.astype(jnp.float32), jnp.ones((B, 1), jnp.float32)], axis=-1)

    tb = _pick_batch_tile(B, batch_tile)
    grid = (pl.cdiv(B, tb),)

    # Explicit VMEM budget: double-buffered x/out tiles + resident weights + y slab headroom.
    est_bytes = 4 * (2 * tb * S_aug + 2 * tb * out_dim
                     + 2 * S_aug * fused_dim + 3 * tb * fused_dim)
    vmem_limit = int(min(max(2 * est_bytes, 32 * 2 ** 20), 56 * 2 ** 20))

    kernel = functools.partial(_point_estimator_kernel,
                               n_pts, pred_len, comp_pad, pts_pad_out)

    packed = pl.pallas_call(
        kernel,
        grid_spec=pltpu.PrefetchScalarGridSpec(
            num_scalar_prefetch=0,
            grid=grid,
            in_specs=[
                pl.BlockSpec((tb, S_aug), lambda i: (i, 0)),          # x batch tile (+bias col)
                pl.BlockSpec((S_aug, fused_dim), lambda i: (0, 0)),   # fused weights (resident)
            ],
            out_specs=pl.BlockSpec((tb, out_dim), lambda i: (i, 0)),  # lane-dense packed output
        ),
        out_shape=jax.ShapeDtypeStruct((B, out_dim), jnp.float32),
        compiler_params=pltpu.CompilerParams(
            dimension_semantics=("parallel",),       # shards batch tiles across v7x's 2 TCs
            vmem_limit_bytes=vmem_limit),
    )(x_aug, w_fused)

    # Layout plumbing stays in the wrapper (reshape / padding slice / int cast).
    params = packed[:, :comp_out_dim].reshape(B, n_slots, n_params)
    pts = packed[:, comp_pad:comp_pad + n_pts].astype(jnp.int32)   # torch returns int64
    return pts, params


# ---------------------------------------------------------------------------
# Pure-JAX reference for validation
# ---------------------------------------------------------------------------
def _reference(x, pts_w, pts_b, comp_w, comp_b, *, n_pts, pred_len, n_params):
    B = x.shape[0]
    y = (x @ pts_w + pts_b).reshape(B, n_pts, pred_len)
    pts = jnp.sort(jnp.argmax(y, axis=-1).astype(jnp.int32), axis=-1)
    params = (x @ comp_w + comp_b).reshape(B, n_pts + 1, n_params)
    return pts, params


# TODO(synk): PointEstimator._generate is @abstractmethod (subclass-specific); the kernel
#             returns (pts, params), the complete concrete part of forward().  combine_lin
#             and the _combine_* / _get_pts_* helpers are not invoked by forward() itself.

if __name__ == "__main__":
    # Small shapes consistent with the module.
    B, seq_len, pred_len, n_pts, n_params = 2, 8, 8, 3, 4
    n_slots = n_pts + 1

    key = jax.random.PRNGKey(0)
    k_x, k_pw, k_pb, k_cw = jax.random.split(key, 4)

    x = jax.random.normal(k_x, (B, seq_len), dtype=jnp.float32)

    # pts_lin: default nn.Linear init ~ U(-1/sqrt(in), 1/sqrt(in)) for weight and bias.
    bound = 1.0 / jnp.sqrt(jnp.float32(seq_len))
    pts_w = jax.random.uniform(k_pw, (seq_len, n_pts * pred_len),
                               minval=-bound, maxval=bound, dtype=jnp.float32)
    pts_b = jax.random.uniform(k_pb, (1, n_pts * pred_len),
                               minval=-bound, maxval=bound, dtype=jnp.float32)

    # component_lin: __init_weights_uniform -> weight ~ U(-1/sqrt(in), 1/sqrt(in)), bias = 0.
    comp_w = jax.random.uniform(k_cw, (seq_len, n_slots * n_params),
                                minval=-bound, maxval=bound, dtype=jnp.float32)
    comp_b = jnp.zeros((1, n_slots * n_params), dtype=jnp.float32)

    pts, params = point_estimator_forward(
        x, pts_w, pts_b, comp_w, comp_b,
        n_pts=n_pts, pred_len=pred_len, n_params=n_params)
    jax.block_until_ready((pts, params))

    ref_pts, ref_params = _reference(
        x, pts_w, pts_b, comp_w, comp_b,
        n_pts=n_pts, pred_len=pred_len, n_params=n_params)

    assert jnp.array_equal(pts, ref_pts), (pts, ref_pts)
    assert jnp.allclose(params, ref_params, atol=1e-5, rtol=1e-5)

    print("KERNEL_OK")
</pallas_src>

<mosaic_0001>
module attributes {stable_mosaic.version = 11 : i64} {
  func.func @_point_estimator_kernel(%arg0: i32, %arg1: memref<2x9xf32, #tpu.memory_space<vmem>>, %arg2: memref<9x256xf32, #tpu.memory_space<vmem>>, %arg3: memref<2x256xf32, #tpu.memory_space<vmem>>) attributes {dimension_semantics = [#tpu.dimension_semantics<parallel>], iteration_bounds = array<i64: 1>, scalar_prefetch = 0 : i64, scratch_operands = 0 : i64, tpu.core_type = #tpu.core_type<tc>, window_params = [{transform_indices = @transform_0, window_bounds = array<i64: 2, 9>}, {pipeline_mode = #tpu.pipeline_mode<synchronous>, transform_indices = @transform_1, window_bounds = array<i64: 9, 256>}, {transform_indices = @transform_2, window_bounds = array<i64: 2, 256>}]} {
    %c0 = arith.constant 0 : index
    %c0_0 = arith.constant 0 : index
    %0 = vector.load %arg1[%c0, %c0_0] : memref<2x9xf32, #tpu.memory_space<vmem>>, vector<2x9xf32>
    %c0_1 = arith.constant 0 : index
    %c0_2 = arith.constant 0 : index
    %1 = vector.load %arg2[%c0_1, %c0_2] : memref<9x256xf32, #tpu.memory_space<vmem>>, vector<9x256xf32>
    %cst = arith.constant dense<0.000000e+00> : vector<2x256xf32>
    %2 = tpu.matmul %0, %1, %cst {dimension_numbers = #tpu.dot_dimension_numbers<[1], [0], [0], [1], [0, 0, 1, 1], [], []>} : vector<2x9xf32>, vector<9x256xf32>, vector<2x256xf32> -> vector<2x256xf32>
    %3 = vector.extract_strided_slice %2 {offsets = [0, 0], sizes = [2, 128], strides = [1, 1]} : vector<2x256xf32> to vector<2x128xf32>
    %4 = tpu.iota {dimensions = array<i32: 1>} : vector<2x8xi32>
    %5 = vector.extract_strided_slice %2 {offsets = [0, 128], sizes = [2, 8], strides = [1, 1]} : vector<2x256xf32> to vector<2x8xf32>
    %cst_3 = arith.constant dense<0xFF800000> : vector<2xf32>
    %6 = vector.multi_reduction <maximumf>, %5, %cst_3 [1] : vector<2x8xf32> to vector<2xf32>
    %7 = vector.shape_cast %6 : vector<2xf32> to vector<2x1xf32>
    %8 = vector.broadcast %7 : vector<2x1xf32> to vector<2x8xf32>
    %9 = arith.cmpf oeq, %5, %8 : vector<2x8xf32>
    %c8_i32 = arith.constant 8 : i32
    %10 = vector.broadcast %c8_i32 : i32 to vector<2x8xi32>
    %11 = arith.select %9, %4, %10 : vector<2x8xi1>, vector<2x8xi32>
    %cst_4 = arith.constant dense<2147483647> : vector<2xi32>
    %12 = vector.multi_reduction <minsi>, %11, %cst_4 [1] : vector<2x8xi32> to vector<2xi32>
    %13 = vector.shape_cast %12 : vector<2xi32> to vector<2x1xi32>
    %14 = vector.extract_strided_slice %2 {offsets = [0, 136], sizes = [2, 8], strides = [1, 1]} : vector<2x256xf32> to vector<2x8xf32>
    %cst_5 = arith.constant dense<0xFF800000> : vector<2xf32>
    %15 = vector.multi_reduction <maximumf>, %14, %cst_5 [1] : vector<2x8xf32> to vector<2xf32>
    %16 = vector.shape_cast %15 : vector<2xf32> to vector<2x1xf32>
    %17 = vector.broadcast %16 : vector<2x1xf32> to vector<2x8xf32>
    %18 = arith.cmpf oeq, %14, %17 : vector<2x8xf32>
    %c8_i32_6 = arith.constant 8 : i32
    %19 = vector.broadcast %c8_i32_6 : i32 to vector<2x8xi32>
    %20 = arith.select %18, %4, %19 : vector<2x8xi1>, vector<2x8xi32>
    %cst_7 = arith.constant dense<2147483647> : vector<2xi32>
    %21 = vector.multi_reduction <minsi>, %20, %cst_7 [1] : vector<2x8xi32> to vector<2xi32>
    %22 = vector.shape_cast %21 : vector<2xi32> to vector<2x1xi32>
    %23 = vector.extract_strided_slice %2 {offsets = [0, 144], sizes = [2, 8], strides = [1, 1]} : vector<2x256xf32> to vector<2x8xf32>
    %cst_8 = arith.constant dense<0xFF800000> : vector<2xf32>
    %24 = vector.multi_reduction <maximumf>, %23, %cst_8 [1] : vector<2x8xf32> to vector<2xf32>
    %25 = vector.shape_cast %24 : vector<2xf32> to vector<2x1xf32>
    %26 = vector.broadcast %25 : vector<2x1xf32> to vector<2x8xf32>
    %27 = arith.cmpf oeq, %23, %26 : vector<2x8xf32>
    %c8_i32_9 = arith.constant 8 : i32
    %28 = vector.broadcast %c8_i32_9 : i32 to vector<2x8xi32>
    %29 = arith.select %27, %4, %28 : vector<2x8xi1>, vector<2x8xi32>
    %cst_10 = arith.constant dense<2147483647> : vector<2xi32>
    %30 = vector.multi_reduction <minsi>, %29, %cst_10 [1] : vector<2x8xi32> to vector<2xi32>
    %31 = vector.shape_cast %30 : vector<2xi32> to vector<2x1xi32>
    %32 = tpu.concatenate %13, %22, %31 in 1 : vector<2x1xi32>, vector<2x1xi32>, vector<2x1xi32> -> vector<2x3xi32>
    %33 = vector.shape_cast %32 : vector<2x3xi32> to vector<2x3x1xi32>
    %34 = vector.shape_cast %32 : vector<2x3xi32> to vector<2x1x3xi32>
    %35 = tpu.iota {dimensions = array<i32: 1>} : vector<1x3x3xi32>
    %36 = tpu.iota {dimensions = array<i32: 2>} : vector<1x3x3xi32>
    %37 = vector.broadcast %34 : vector<2x1x3xi32> to vector<2x3x3xi32>
    %38 = vector.broadcast %33 : vector<2x3x1xi32> to vector<2x3x3xi32>
    %39 = arith.cmpi slt, %37, %38 : vector<2x3x3xi32>
    %40 = vector.broadcast %34 : vector<2x1x3xi32> to vector<2x3x3xi32>
    %41 = vector.broadcast %33 : vector<2x3x1xi32> to vector<2x3x3xi32>
    %42 = arith.cmpi eq, %40, %41 : vector<2x3x3xi32>
    %43 = arith.cmpi slt, %36, %35 : vector<1x3x3xi32>
    %44 = vector.broadcast %43 : vector<1x3x3xi1> to vector<2x3x3xi1>
    %45 = arith.andi %42, %44 : vector<2x3x3xi1>
    %46 = arith.ori %39, %45 : vector<2x3x3xi1>
    %47 = arith.extui %46 : vector<2x3x3xi1> to vector<2x3x3xi32>
    %cst_11 = arith.constant dense<0> : vector<2x3xi32>
    %48 = vector.multi_reduction <add>, %47, %cst_11 [2] : vector<2x3x3xi32> to vector<2x3xi32>
    %49 = tpu.iota {dimensions = array<i32: 2>} : vector<1x1x3xi32>
    %50 = vector.shape_cast %48 : vector<2x3xi32> to vector<2x3x1xi32>
    %51 = vector.broadcast %50 : vector<2x3x1xi32> to vector<2x3x3xi32>
    %52 = vector.broadcast %49 : vector<1x1x3xi32> to vector<2x3x3xi32>
    %53 = arith.cmpi eq, %51, %52 : vector<2x3x3xi32>
    %54 = vector.shape_cast %32 : vector<2x3xi32> to vector<2x3x1xi32>
    %c0_i32 = arith.constant 0 : i32
    %55 = vector.shape_cast %54 : vector<2x3x1xi32> to vector<2x3x1xi32>
    %56 = vector.broadcast %55 : vector<2x3x1xi32> to vector<2x3x3xi32>
    %57 = vector.broadcast %c0_i32 : i32 to vector<2x3x3xi32>
    %58 = arith.select %53, %56, %57 : vector<2x3x3xi1>, vector<2x3x3xi32>
    %cst_12 = arith.constant dense<0> : vector<2x3xi32>
    %59 = vector.multi_reduction <add>, %58, %cst_12 [1] : vector<2x3x3xi32> to vector<2x3xi32>
    %60 = arith.sitofp %59 : vector<2x3xi32> to vector<2x3xf32>
    %cst_13 = arith.constant 0.000000e+00 : f32
    %61 = vector.broadcast %cst_13 : f32 to vector<2x125xf32>
    %62 = tpu.concatenate %60, %61 in 1 : vector<2x3xf32>, vector<2x125xf32> -> vector<2x128xf32>
    %63 = tpu.concatenate %3, %62 in 1 : vector<2x128xf32>, vector<2x128xf32> -> vector<2x256xf32>
    %c0_14 = arith.constant 0 : index
    %c0_15 = arith.constant 0 : index
    %64 = vector.load %arg3[%c0_14, %c0_15] : memref<2x256xf32, #tpu.memory_space<vmem>>, vector<2x256xf32>
    tpu.vector_store %arg3[%c0_14, %c0_15], %63 {strides = array<i32>} : memref<2x256xf32, #tpu.memory_space<vmem>>, vector<2x256xf32>,
    return
  }
  func.func @transform_0(%arg0: i32) -> (i32, i32) {
    %c0_i32 = arith.constant 0 : i32
    %c0_i32_0 = arith.constant 0 : i32
    return %arg0, %c0_i32 : i32, i32
  }
  func.func @transform_1(%arg0: i32) -> (i32, i32) {
    %c0_i32 = arith.constant 0 : i32
    %c0_i32_0 = arith.constant 0 : i32
    %c0_i32_1 = arith.constant 0 : i32
    return %c0_i32, %c0_i32_0 : i32, i32
  }
  func.func @transform_2(%arg0: i32) -> (i32, i32) {
    %c0_i32 = arith.constant 0 : i32
    %c0_i32_0 = arith.constant 0 : i32
    return %arg0, %c0_i32 : i32, i32
  }
}

</mosaic_0001>

<llo_original>
// kernel: tpu_custom_call.1
$region0: #{tpu_custom_call.1}
  #allocation0 [shape = 'u32[]', space=smem, size = 0x4, offset = 0x4, fixed_abs, tag = 'smem constant byte address 0x4 - core index']
  #allocation1 [shape = 'u32[144,128]{1,0:T(1,128)}', space=vmem, size = 0x12000, scoped, tag = 'internal scratch']
  %s0 = inlined_call_operand.hbm [shape: f32[2,9], index: 0, kind: input, shape index: {}]
  %s1 = inlined_call_operand.hbm [shape: f32[9,256], index: 1, kind: input, shape index: {}]
  %s2 = inlined_call_operand.hbm [shape: f32[2,256], index: 2, kind: output, shape index: {}]
  %s3 = sld [smem:[#allocation0]]
  $region26: #{tpu_custom_call.1} parent=0
    _
  %s5 = ssub.s32 1, %s3
  %s6 = scalar_select 0, %s5, %s3
  $region1: #{tpu_custom_call.1} parent=0
    #allocation2 [shape = 'u8[1024]{0}', space=vmem, size = 0x400, scoped, tag = 'input window, operand 0, single buffered']
    #allocation3 [shape = 's32[1]{0}', space=sflag, size = 0x4, scoped, tag = 'scoped memory for tpu_custom_call.1']
    #allocation4 [shape = 's32[1]{0}', space=sflag, size = 0x4, scoped, tag = 'scoped memory for tpu_custom_call.1']
    #allocation5 [shape = 'u8[16384]{0}', space=vmem, size = 0x4000, scoped, tag = 'input window, operand 1, single buffered']
    #allocation6 [shape = 's32[1]{0}', space=sflag, size = 0x4, scoped, tag = 'scoped memory for tpu_custom_call.1']
    #allocation7 [shape = 'u8[2048]{0}', space=vmem, size = 0x800, scoped, tag = 'output window, operand 0, single buffered']
    %7 = vsyncpa [#allocation3], 0
    %8 = vsyncpa [#allocation6], 0
    %9 = vsyncpa [#allocation4], 0
    // Predicated region
    $region2: #{tpu_custom_call.1} parent=1 // pred_check
      _
    $region3: #{tpu_custom_call.1} parent=1 // pred_check_branch
      %11 = sbr.rel (0) target = $region5
    $region4: #{tpu_custom_call.1} parent=1 // pred_region
      %s13 = ssub.s32 32, 32
      %14 = vsyncadd [#allocation3], %s13
      %s16 = sshll.u32 [#allocation2], 4
      %s17 = int_to_ptr.vmem [resolvable:$true] %s16
      %19 = dma.hbm_to_vmem [thread:$0]  %s0, 32, %s17, [#allocation3]
    $region5: #{tpu_custom_call.1} parent=1 // pred_fallthru
      _
    // Predicated region
    $region6: #{tpu_custom_call.1} parent=1 // pred_check
      _
    $region7: #{tpu_custom_call.1} parent=1 // pred_check_branch
      %21 = sbr.rel (0) target = $region9
    $region8: #{tpu_custom_call.1} parent=1 // pred_region
      %s23 = ssub.s32 512, 512
      %24 = vsyncadd [#allocation6], %s23
      %s25 = sshll.u32 [#allocation5], 4
      %s26 = int_to_ptr.vmem [resolvable:$true] %s25
      %31 = dma.hbm_to_vmem [thread:$0]  %s1, 512, %s26, [#allocation6], 256, 256, 16
    $region9: #{tpu_custom_call.1} parent=1 // pred_fallthru
      _
    // Predicated region
    $region10: #{tpu_custom_call.1} parent=1 // pred_check
      _
    $region11: #{tpu_custom_call.1} parent=1 // pred_check_branch
      %33 = sbr.rel (0) target = $region13
    $region12: #{tpu_custom_call.1} parent=1 // pred_region
      %34 = dma.done [#allocation3], 32
    $region13: #{tpu_custom_call.1} parent=1 // pred_fallthru
      _
    // Predicated region
    $region14: #{tpu_custom_call.1} parent=1 // pred_check
      _
    $region15: #{tpu_custom_call.1} parent=1 // pred_check_branch
      %36 = sbr.rel (0) target = $region17
    $region16: #{tpu_custom_call.1} parent=1 // pred_region
      %37 = dma.done [#allocation6], 512
    $region17: #{tpu_custom_call.1} parent=1 // pred_fallthru
      _
    %v38 = vld [vmem:[#allocation2] sm:$0x3]
    %v39 = vld [vmem:[#allocation5] sm:$0xff]
    %v40 = vld [vmem:[#allocation5 + $0x8] sm:$0xff]
    %v41 = vld [vmem:[#allocation5 + $0x10] sm:$0x1]
    %v42 = vld [vmem:[#allocation5 + $0x18] sm:$0x1]
    %vm43 = vcmask 72704
    %v45 = vsel %vm43, %v38, 0
    %vm47 = vcmask 1040384
    %v49 = vsel %vm47, %v41, 0
    %v52 = vsel %vm47, %v42, 0
    %54 = vmatprep.subr.mxu0 %v40
    %55 = vmatpush1.msra.mxu0 %v39
    %56 = vmatprep.subr.mxu0 %v52
    %57 = vmatpush1.msra.mxu0 %v49
    %58 = vmatprep.subr.mxu0 0.0
    %59 = vmatpush1.msra.mxu0 0.0
    %60 = vmatprep.subr.mxu0 0.0
    %61 = vmatpush1.msra.mxu0 0.0
    %62 = vmatprep.subr.mxu0 0.0
    %63 = vmatpush1.msra.mxu0 0.0
    %64 = vmatprep.subr.mxu0 0.0
    %65 = vmatpush1.msra.mxu0 0.0
    %66 = vmatprep.subr.mxu0 0.0
    %67 = vmatpush1.msra.mxu0 0.0
    %68 = vmatprep.subr.mxu0 0.0
    %69 = vmatpush1.msra.mxu0 0.0
    %70 = vmatprep.subr.mxu0 0.0
    %71 = vmatpush1.msra.mxu0 0.0
    %72 = vmatprep.subr.mxu0 0.0
    %73 = vmatpush1.msra.mxu0 0.0
    %74 = vmatprep.subr.mxu0 0.0
    %75 = vmatpush1.msra.mxu0 0.0
    %76 = vmatprep.subr.mxu0 0.0
    %77 = vmatpush1.msra.mxu0 0.0
    %78 = vmatprep.subr.mxu0 0.0
    %79 = vmatpush1.msra.mxu0 0.0
    %80 = vmatprep.subr.mxu0 0.0
    %81 = vmatpush1.msra.mxu0 0.0
    %82 = vmatprep.subr.mxu0 0.0
    %83 = vmatpush1.msra.mxu0 0.0
    %84 = vmatprep.subr.mxu0 0.0
    %85 = vmatpush1.msra.mxu0 0.0
    %86 = vmatprep.subr.mxu0 0.0
    %87 = vmatpush1.msra.mxu0 0.0
    %88 = vmatprep.subr.mxu0 0.0
    %89 = vmatpush1.msra.mxu0 0.0
    %90 = vmatprep.subr.mxu0 0.0
    %91 = vmatpush1.msra.mxu0 0.0
    %92 = vmatprep.subr.mxu0 0.0
    %93 = vmatpush1.msra.mxu0 0.0
    %94 = vmatprep.subr.mxu0 0.0
    %95 = vmatpush1.msra.mxu0 0.0
    %96 = vmatprep.subr.mxu0 0.0
    %97 = vmatpush1.msra.mxu0 0.0
    %98 = vmatprep.subr.mxu0 0.0
    %99 = vmatpush1.msra.mxu0 0.0
    %100 = vmatprep.subr.mxu0 0.0
    %101 = vmatpush1.msra.mxu0 0.0
    %102 = vmatprep.subr.mxu0 0.0
    %103 = vmatpush1.msra.mxu0 0.0
    %104 = vmatprep.subr.mxu0 0.0
    %105 = vmatpush1.msra.mxu0 0.0
    %106 = vmatprep.subr.mxu0 0.0
    %107 = vmatpush1.msra.mxu0 0.0
    %108 = vmatprep.subr.mxu0 0.0
    %109 = vmatpush1.msra.mxu0 0.0
    %110 = vmatprep.subr.mxu0 0.0
    %111 = vmatpush1.msra.mxu0 0.0
    %112 = vmatprep.subr.mxu0 0.0
    %113 = vmatpush1.msra.mxu0 0.0
    %114 = vmatprep.subr.mxu0 0.0
    %115 = vmatpush1.msra.mxu0 0.0
    %116 = vmatprep.subr.mxu0 0.0
    %117 = vmatpush1.msra.mxu0 0.0
    %118 = vmatprep.mubr.f32.mxu0 0.0
    %119 = vmatmul.mubr.f32.gmra.mrb[0].mxu0 %v45
    %v120 = vpop.f32.mrb[0].mxu0
    %v121 = vadd.f32 0.0, %v120
    %v122 = vpop.f32.mrb[0].mxu0
    %v123 = vadd.f32 0.0, %v122
    %124 = vdwg.mxu0
    %v125 = vlaneseq
    %v126 = vand.u32 %v125, 127
    %vm127 = vcmask 58368
    %v128 = vsel %vm127, %v123, -inf
    %129 = vmax.xlane.f32.xlu0 %v128
    %v130 = vpop.xlane.xlu0 %129
    %vm131 = vcmp.eq.f32.partialorder %v123, %v130
    %v132 = vsel %vm131, %v126, 8
    %v133 = vsel %vm127, %v132, 2147483647
    %v134 = vand.u32 %v133, 65535
    %v135 = vshra.s32 %v133, 16
    %v136 = vcvt.s32.f32 %v134
    %v137 = vcvt.s32.f32 %v135
    %138 = vmin.xlane.f32.xlu0 %v137
    %v139 = vpop.xlane.xlu0 %138
    %vm140 = vcmp.eq.f32.partialorder %v137, %v139
    %v141 = vsel %vm140, %v136, inf
    %142 = vmin.xlane.f32.xlu0 %v141
    %v143 = vpop.xlane.xlu0 %142
    %v144 = vcvt.f32.s32 %v143
    %v145 = vcvt.f32.s32 %v139
    %v146 = vshll.u32 %v145, 16
    %v147 = vadd.s32 %v146, %v144
    %vm148 = vcmask 123968
    %v149 = vsel %vm148, %v123, -inf
    %150 = vmax.xlane.f32.xlu0 %v149
    %v151 = vpop.xlane.xlu0 %150
    %vm152 = vcmp.eq.f32.partialorder %v123, %v151
    %153 = vrot.lane.b32.xlu0 %v126, 8
    %v154 = vpop.permute.xlu0 %153
    %v155 = vsel %vm152, %v154, 8
    %v156 = vsel %vm148, %v155, 2147483647
    %v157 = vand.u32 %v156, 65535
    %v158 = vshra.s32 %v156, 16
    %v159 = vcvt.s32.f32 %v157
    %v160 = vcvt.s32.f32 %v158
    %161 = vmin.xlane.f32.xlu0 %v160
    %v162 = vpop.xlane.xlu0 %161
    %vm163 = vcmp.eq.f32.partialorder %v160, %v162
    %v164 = vsel %vm163, %v159, inf
    %165 = vmin.xlane.f32.xlu0 %v164
    %v166 = vpop.xlane.xlu0 %165
    %v167 = vcvt.f32.s32 %v166
    %v168 = vcvt.f32.s32 %v162
    %v169 = vshll.u32 %v168, 16
    %v170 = vadd.s32 %v169, %v167
    %vm171 = vcmask 189568
    %v172 = vsel %vm171, %v123, -inf
    %173 = vmax.xlane.f32.xlu0 %v172
    %v174 = vpop.xlane.xlu0 %173
    %vm175 = vcmp.eq.f32.partialorder %v123, %v174
    %176 = vrot.lane.b32.xlu0 %v126, 16
    %v177 = vpop.permute.xlu0 %176
    %v178 = vsel %vm175, %v177, 8
    %v179 = vsel %vm171, %v178, 2147483647
    %v180 = vand.u32 %v179, 65535
    %v181 = vshra.s32 %v179, 16
    %v182 = vcvt.s32.f32 %v180
    %v183 = vcvt.s32.f32 %v181
    %184 = vmin.xlane.f32.xlu0 %v183
    %v185 = vpop.xlane.xlu0 %184
    %vm186 = vcmp.eq.f32.partialorder %v183, %v185
    %v187 = vsel %vm186, %v182, inf
    %188 = vmin.xlane.f32.xlu0 %v187
    %v189 = vpop.xlane.xlu0 %188
    %v190 = vcvt.f32.s32 %v189
    %v191 = vcvt.f32.s32 %v185
    %v192 = vshll.u32 %v191, 16
    %v193 = vadd.s32 %v192, %v190
    %vm194 = vcmask 7168
    %v195 = vsel %vm194, %v147, %v170
    %vm196 = vcmask 15360
    %v197 = vsel %vm196, %v195, %v193
    %v198 = vlaneseq
    %v199 = vshrl.u32 %v198, 7
    %v200 = vsub.s32 0, %v199
    %v201 = vrot.slane %v197, %v200
    %203 = vbcast.lane.b32.xlu0 %v201, 256
    %v204 = vpop.permute.xlu0 %203
    %v205 = vlaneseq
    %v206 = vshrl.u32 %v205, 7
    %v207 = vsub.s32 1, %v206
    %v208 = vrot.slane %v197, %v207
    %210 = vbcast.lane.b32.xlu0 %v208, 256
    %v211 = vpop.permute.xlu0 %210
    %v213 = vunpack.c.l.s4 1966171168
    %v214 = vunpack.c.0.s8 %v213
    %v215 = vlaneseq
    %v216 = vshrl.u32 %v215, 7
    %v217 = vsub.s32 %v214, %v216
    %v218 = vrot.slane %v197, %v217
    %v219 = vcombine.high %v218, %v218
    %v221 = vunpack.c.l.s4 1966171168
    %v222 = vunpack.c.0.s8 %v221
    %v223 = vlaneseq
    %v224 = vshrl.u32 %v223, 7
    %v225 = vsub.s32 %v222, %v224
    %v226 = vrot.slane %v218, %v225
    %v228 = vunpack.c.l.s4 1966171168
    %v229 = vunpack.c.0.s8 %v228
    %v230 = vlaneseq
    %v231 = vshrl.u32 %v230, 7
    %v232 = vsub.s32 %v229, %v231
    %v233 = vrot.slane %v219, %v232
    %v234 = vlaneseq
    %v235 = vshrl.u32 %v234, 7
    %v236 = vlaneseq
    %v237 = vshrl.u32 %v236, 7
    %v238 = vsub.s32 0, %v237
    %v239 = vrot.slane %v226, %v238
    %v240 = vlaneseq
    %v241 = vshrl.u32 %v240, 7
    %v242 = vsub.s32 0, %v241
    %v243 = vrot.slane %v233, %v242
    %vm244 = vcmp.lt.s32.totalorder %v239, %v204
    %vm245 = vcmp.lt.s32.totalorder %v243, %v211
    %vm246 = vcmp.eq.s32.totalorder %v239, %v204
    %vm247 = vcmp.eq.s32.totalorder %v243, %v211
    %vm248 = vcmp.lt.s32.totalorder %v126, %v235
    %v249 = vsel %vm248, 1, 0
    %vm250 = vcmp.eq.s32.totalorder %v249, 1
    %vm251 = vmand %vm246, %vm250
    %vm252 = vmand %vm247, %vm250
    %vm253 = vmor %vm244, %vm251
    %vm254 = vmor %vm245, %vm252
    %v255 = vsel %vm253, 1, 0
    %v256 = vsel %vm254, 1, 0
    %vm257 = vcmask 18432
    %v258 = vsel %vm257, %v255, 0
    %v259 = vand.u32 %v258, 65535
    %v260 = vshrl.u32 %v258, 16
    %v261 = vcvt.s32.f32 %v259
    %v262 = vcvt.s32.f32 %v260
    %263 = vadd.xlane.f32.xlu0 %v261
    %v264 = vpop.xlane.xlu0 %263
    %265 = vadd.xlane.f32.xlu0 %v262
    %v266 = vpop.xlane.xlu0 %265
    %v267 = vcvt.f32.s32 %v264
    %v268 = vcvt.f32.s32 %v266
    %v269 = vshll.u32 %v268, 16
    %v270 = vadd.s32 %v269, %v267
    %v271 = vsel %vm257, %v256, 0
    %v272 = vand.u32 %v271, 65535
    %v273 = vshrl.u32 %v271, 16
    %v274 = vcvt.s32.f32 %v272
    %v275 = vcvt.s32.f32 %v273
    %276 = vadd.xlane.f32.xlu0 %v274
    %v277 = vpop.xlane.xlu0 %276
    %278 = vadd.xlane.f32.xlu0 %v275
    %v279 = vpop.xlane.xlu0 %278
    %v280 = vcvt.f32.s32 %v277
    %v281 = vcvt.f32.s32 %v279
    %v282 = vshll.u32 %v281, 16
    %v283 = vadd.s32 %v282, %v280
    %vm284 = vcmp.eq.s32.totalorder %v270, %v126
    %vm285 = vcmp.eq.s32.totalorder %v283, %v126
    %v286 = vsel %vm284, %v204, 0
    %v287 = vsel %vm285, %v211, 0
    %v288 = vsel %vm257, %v286, 0
    %v289 = vrot.slane %v288, 4
    %v290 = vadd.s32 %v288, %v289
    %v291 = vrot.slane %v290, 2
    %v292 = vadd.s32 %v290, %v291
    %v293 = vrot.slane %v292, 1
    %v294 = vadd.s32 %v292, %v293
    %v295 = vsel %vm257, %v287, 0
    %v296 = vrot.slane %v295, 4
    %v297 = vadd.s32 %v295, %v296
    %v298 = vrot.slane %v297, 2
    %v299 = vadd.s32 %v297, %v298
    %v300 = vrot.slane %v299, 1
    %v301 = vadd.s32 %v299, %v300
    %v302 = vcvt.s32.f32 %v294
    %v303 = vcvt.s32.f32 %v301
    %vm306 = vcmask 1041409
    %v307 = vsel %vm306, %v303, %v302
    %vm309 = vcmask 23552
    %v310 = vsel %vm309, %v307, 0.0
    %v313 = vcombine.low %v121, %v310
    %v315 = vunpack.c.l.s4 1983009808
    %v316 = vunpack.c.0.s8 %v315
    %v317 = vlaneseq
    %v318 = vshrl.u32 %v317, 7
    %v319 = vsub.s32 %v316, %v318
    %v320 = vrot.slane %v313, %v319
    %322 = vst [vmem:[#allocation7] sm:$0xf] %v320
    // Predicated region
    $region18: #{tpu_custom_call.1} parent=1 // pred_check
      _
    $region19: #{tpu_custom_call.1} parent=1 // pred_check_branch
      %324 = sbr.rel (0) target = $region21
    $region20: #{tpu_custom_call.1} parent=1 // pred_region
      %s326 = ssub.s32 64, 64
      %327 = vsyncadd [#allocation4], %s326
      %s329 = sshll.u32 [#allocation7], 4
      %s330 = int_to_ptr.vmem [resolvable:$true] %s329
      %332 = dma.vmem_to_hbm [thread:$0]  %s330, 64, %s2, [#allocation4]
    $region21: #{tpu_custom_call.1} parent=1 // pred_fallthru
      _
    // Predicated region
    $region22: #{tpu_custom_call.1} parent=1 // pred_check
      _
    $region23: #{tpu_custom_call.1} parent=1 // pred_check_branch
      %334 = sbr.rel (0) target = $region25
    $region24: #{tpu_custom_call.1} parent=1 // pred_region
      %335 = dma.done [#allocation4], 64
    $region25: #{tpu_custom_call.1} parent=1 // pred_fallthru
      _
    %336 = vsyncpa [#allocation3], 1
    %337 = vsyncpa [#allocation6], 1
    %338 = vsyncpa [#allocation4], 1

</llo_original>
